<compile_context>
chip_gen: v7x
topology: tpu7x:2x2x1
jax: 0.10.0
libtpu: 0.0.40
codegen_flags: <defaults>
</compile_context>

<pallas_src>
import jax
import jax.numpy as jnp
from jax.experimental import pallas as pl
from jax.experimental.pallas import tpu as pltpu


def _round_up(x: int, m: int) -> int:
    return (x + m - 1) // m * m


def _vmem_capacity_bytes() -> int:
    """Physical VMEM of the local chip; conservative fallback if unavailable."""
    try:
        return int(pltpu.get_tpu_info().vmem_capacity_bytes)
    except Exception:
        return 64 * 1024 * 1024  # v7x-sized fallback, safe on every generation


def _make_mlp_kernel(depth: int):
    """Build the fused kernel for a static layer count.

    Grid = (batch_tile i, layer l). Ref order:
      x, w_in, b_in, [w_mid, b_mid], [w_last, b_last], out, [h_scratch]
    """
    has_last = depth > 1
    has_mid = depth > 2

    def kernel(*refs):
        it = iter(refs)
        x_ref = next(it)
        w_in_ref = next(it)
        b_in_ref = next(it)
        w_mid_ref = next(it) if has_mid else None
        b_mid_ref = next(it) if has_mid else None
        w_last_ref = next(it) if has_last else None
        b_last_ref = next(it) if has_last else None
        o_ref = next(it)
        h_ref = next(it) if has_last else None

        if not has_last:
            # depth == 1: a single Linear, no activation.
            y = jnp.dot(x_ref[...], w_in_ref[...],
                        preferred_element_type=jnp.float32)
            o_ref[...] = (y + b_in_ref[...]).astype(o_ref.dtype)
            return

        l = pl.program_id(1)
        n_layers = pl.num_programs(1)

        # Layer 0: (tm, Pin) @ (Pin, Ph) -> resident activation buffer.
        @pl.when(l == 0)
        def _():
            y = jnp.dot(x_ref[...], w_in_ref[...],
                        preferred_element_type=jnp.float32)
            y = y + b_in_ref[...]
            h_ref[...] = jnp.maximum(y, 0.0).astype(h_ref.dtype)

        if has_mid:
            # Hidden layers 1..depth-2: (tm, Ph) @ (Ph, Ph), streamed weights.
            @pl.when(jnp.logical_and(l > 0, l < n_layers - 1))
            def _():
                y = jnp.dot(h_ref[...], w_mid_ref[0],
                            preferred_element_type=jnp.float32)
                y = y + b_mid_ref[0]
                h_ref[...] = jnp.maximum(y, 0.0).astype(h_ref.dtype)

        # Last layer: (tm, Ph) @ (Ph, Pout) -> HBM output, no activation.
        @pl.when(l == n_layers - 1)
        def _():
            y = jnp.dot(h_ref[...], w_last_ref[...],
                        preferred_element_type=jnp.float32)
            y = y + b_last_ref[...]
            o_ref[...] = y.astype(o_ref.dtype)

    return kernel


def mlp_forward(params, x, *, act_fn_out=None, compute_dtype=jnp.bfloat16):
    """Mirrors MLP.forward (Linear + ReLU between hidden layers) as one fused
    Pallas kernel. `params` is a list of (W[in,out], b[out]) per layer.
    Optional `act_fn_out` is applied as plain JAX glue after the kernel."""
    # TODO(synk): non-ReLU `act_fn` (module default is ReLU) is not fused.
    depth = len(params)
    B, dim_in = x.shape
    dim_out = params[-1][0].shape[1]
    width = params[0][0].shape[1]          # == dim_out when depth == 1
    out_dtype = x.dtype

    c = jnp.dtype(compute_dtype).itemsize
    o = jnp.dtype(out_dtype).itemsize

    # --- rectangular, lane-dense padding --------------------------------
    Pin = _round_up(dim_in, 128)
    Pout = _round_up(dim_out, 128)
    Ph = _round_up(width, 128) if depth > 1 else 0
    Pmid = Ph if depth > 1 else Pout       # output width of layer 0
    n_mid = max(depth - 2, 0)

    w0, b0 = params[0]
    w_in = jnp.zeros((Pin, Pmid), compute_dtype)
    w_in = w_in.at[:dim_in, :w0.shape[1]].set(w0.astype(compute_dtype))
    b_in = jnp.zeros((1, Pmid), jnp.float32)
    b_in = b_in.at[0, :b0.shape[0]].set(b0.astype(jnp.float32))

    if depth > 2:
        w_mid = jnp.zeros((n_mid, Ph, Ph), compute_dtype)
        b_mid = jnp.zeros((n_mid, 1, Ph), jnp.float32)
        for j in range(n_mid):
            w, b = params[1 + j]
            w_mid = w_mid.at[j, :w.shape[0], :w.shape[1]].set(
                w.astype(compute_dtype))
            b_mid = b_mid.at[j, 0, :b.shape[0]].set(b.astype(jnp.float32))
    if depth > 1:
        wl, bl = params[-1]
        w_last = jnp.zeros((Ph, Pout), compute_dtype)
        w_last = w_last.at[:wl.shape[0], :dim_out].set(wl.astype(compute_dtype))
        b_last = jnp.zeros((1, Pout), jnp.float32)
        b_last = b_last.at[0, :dim_out].set(bl.astype(jnp.float32))

    # --- batch tile + VMEM budget (generation aware) --------------------
    sub = max(8, 32 // c)                   # sublane packing (16 for bf16)
    # Deeper prefetch of the streamed middle weights only for deep, narrow
    # stacks (latency-bound regime); never triggers for small depth.
    mid_bufs = 3 if (n_mid >= 4 and Ph * Ph * c <= 2 * 1024 * 1024) else 2

    w_vmem = 2 * Pin * Pmid * c
    if depth > 2:
        w_vmem += mid_bufs * Ph * Ph * c
    if depth > 1:
        w_vmem += 2 * Ph * Pout * c
    bias_vmem = 2 * 4 * (Pmid + (Ph if depth > 2 else 0)
                         + (Pout if depth > 1 else 0))

    def vmem_need(tm):
        n = w_vmem + bias_vmem
        n += 2 * tm * Pin * c               # x double buffer
        n += 2 * tm * Pout * o              # out double buffer
        if depth > 1:
            n += tm * Ph * c                # resident activation scratch
        return n

    vmem_cap = _vmem_capacity_bytes()
    budget = max(vmem_cap - 8 * 1024 * 1024, 24 * 1024 * 1024)

    if B <= 128:
        tm = _round_up(B, sub)              # tiny batch: single small tile
    elif B <= 512:
        tm = 256                            # never drop to 128 (MXU M underfill)
    else:
        # Large batch: biggest tile (multiple of 256, up to 1024) that fits the
        # VMEM budget, adds no extra padding, and keeps >= 2 batch tiles so the
        # "parallel" axis can feed both TensorCores on dual-core chips.
        tm = 256
        for cand in (512, 768, 1024):
            if (cand * 2 <= _round_up(B, cand)
                    and _round_up(B, cand) <= _round_up(B, 256)
                    and vmem_need(cand) <= budget):
                tm = cand
    while tm > sub and vmem_need(tm) > budget:
        tm = max(sub, _round_up(tm // 2, sub))
    # TODO(synk): for very wide hidden layers (the (Ph, Ph) weight double
    # buffer alone approaching the VMEM budget) an output-column (N) tiling
    # grid axis would be needed; not implemented here.

    Bp = _round_up(B, tm)
    n_tiles = Bp // tm
    need = vmem_need(tm)
    vmem_limit = int(min(max(2 * need, 32 * 1024 * 1024), budget))

    xp = jnp.zeros((Bp, Pin), compute_dtype)
    xp = xp.at[:B, :dim_in].set(x.astype(compute_dtype))

    # --- cost estimate (weights re-streamed once per batch tile) --------
    flops = 2 * Bp * Pin * Pmid
    if depth > 2:
        flops += 2 * Bp * n_mid * Ph * Ph
    if depth > 1:
        flops += 2 * Bp * Ph * Pout
    bytes_accessed = Bp * Pin * c + Bp * Pout * o + Pin * Pmid * c + 4 * Pmid
    if depth > 2:
        bytes_accessed += n_tiles * n_mid * Ph * Ph * c + 4 * n_mid * Ph
    if depth > 1:
        bytes_accessed += Ph * Pout * c + 4 * Pout
    cost = pl.CostEstimate(flops=int(flops), transcendentals=0,
                           bytes_accessed=int(bytes_accessed))

    # --- specs -----------------------------------------------------------
    in_specs = [
        pl.BlockSpec((tm, Pin), lambda i, l: (i, 0)),     # x rows (held across l)
        pl.BlockSpec((Pin, Pmid), lambda i, l: (0, 0)),   # first-layer W (resident)
        pl.BlockSpec((1, Pmid), lambda i, l: (0, 0)),     # first-layer bias
    ]
    operands = [xp, w_in, b_in]
    if depth > 2:
        def mid_idx(i, l):
            return (jnp.minimum(jnp.maximum(l - 1, 0), n_mid - 1), 0, 0)
        mid_kwargs = dict(pipeline_mode=pl.Buffered(3)) if mid_bufs == 3 else {}
        in_specs += [
            pl.BlockSpec((1, Ph, Ph), mid_idx, **mid_kwargs),  # streamed per layer
            pl.BlockSpec((1, 1, Ph), mid_idx),
        ]
        operands += [w_mid, b_mid]
    if depth > 1:
        in_specs += [
            pl.BlockSpec((Ph, Pout), lambda i, l: (0, 0)),    # last-layer W (resident)
            pl.BlockSpec((1, Pout), lambda i, l: (0, 0)),
        ]
        operands += [w_last, b_last]

    out_spec = pl.BlockSpec((tm, Pout), lambda i, l: (i, 0))
    scratch = [pltpu.VMEM((tm, Ph), compute_dtype)] if depth > 1 else []

    out = pl.pallas_call(
        _make_mlp_kernel(depth),
        out_shape=jax.ShapeDtypeStruct((Bp, Pout), out_dtype),
        grid=(n_tiles, depth),
        in_specs=in_specs,
        out_specs=out_spec,
        scratch_shapes=scratch,
        compiler_params=pltpu.CompilerParams(
            dimension_semantics=("parallel", "arbitrary"),
            vmem_limit_bytes=vmem_limit,
        ),
        cost_estimate=cost,
    )(*operands)

    out = out[:B, :dim_out]
    if act_fn_out is not None:
        out = act_fn_out(out)
    return out


def init_mlp_params(key, dim_in, dim_out, depth, width, dtype=jnp.float32):
    """Deterministic synthetic parameters matching torch.nn.Linear shapes,
    stored already transposed to (in_features, out_features)."""
    params = []
    for layernum in range(depth):
        fin = dim_in if layernum == 0 else width
        fout = dim_out if layernum == depth - 1 else width
        key, kw, kb = jax.random.split(key, 3)
        bound = 1.0 / float(fin) ** 0.5
        w = jax.random.uniform(kw, (fin, fout), dtype, -bound, bound)
        b = jax.random.uniform(kb, (fout,), dtype, -bound, bound)
        params.append((w, b))
    return params


def mlp_reference(params, x, compute_dtype=jnp.bfloat16):
    """Pure-JAX reference mirroring the kernel numerics (bf16 inputs, f32
    accumulation, bf16 rounding of intermediate activations)."""
    depth = len(params)
    h = x.astype(compute_dtype).astype(jnp.float32)
    for i, (w, b) in enumerate(params):
        wq = w.astype(compute_dtype).astype(jnp.float32)
        h = h @ wq + b.astype(jnp.float32)
        if i < depth - 1:
            h = jnp.maximum(h, 0.0).astype(compute_dtype).astype(jnp.float32)
    return h.astype(x.dtype)


if __name__ == "__main__":
    key = jax.random.PRNGKey(0)

    configs = [
        # (dim_in, dim_out, depth, width, batch)
        (32, 16, 3, 64, 8),     # typical small MLP
        (32, 16, 1, 64, 8),     # single-layer edge case
        (32, 16, 2, 64, 8),     # no middle layers
        (48, 24, 3, 96, 300),   # multi batch-tile case (tm=256, 2 tiles)
    ]
    for (dim_in, dim_out, depth, width, batch) in configs:
        key, kx, kp = jax.random.split(key, 3)
        x = jax.random.normal(kx, (batch, dim_in), jnp.float32)
        params = init_mlp_params(kp, dim_in, dim_out, depth, width)

        out = jax.block_until_ready(mlp_forward(params, x))
        ref = mlp_reference(params, x)

        assert out.shape == (batch, dim_out), (out.shape, (batch, dim_out))
        max_err = float(jnp.max(jnp.abs(out - ref)))
        assert jnp.allclose(out, ref, atol=1e-2, rtol=1e-2), max_err

    print("KERNEL_OK")
</pallas_src>

<mosaic_0001>
module attributes {stable_mosaic.version = 11 : i64} {
  func.func @kernel(%arg0: i32, %arg1: i32, %arg2: memref<16x128xbf16, #tpu.memory_space<vmem>>, %arg3: memref<128x128xbf16, #tpu.memory_space<vmem>>, %arg4: memref<1x128xf32, #tpu.memory_space<vmem>>, %arg5: memref<1x128x128xbf16, #tpu.memory_space<vmem>>, %arg6: memref<1x1x128xf32, #tpu.memory_space<vmem>>, %arg7: memref<128x128xbf16, #tpu.memory_space<vmem>>, %arg8: memref<1x128xf32, #tpu.memory_space<vmem>>, %arg9: memref<16x128xf32, #tpu.memory_space<vmem>>, %arg10: memref<16x128xbf16, #tpu.memory_space<vmem>>) attributes {dimension_semantics = [#tpu.dimension_semantics<parallel>, #tpu.dimension_semantics<arbitrary>], iteration_bounds = array<i64: 1, 3>, scalar_prefetch = 0 : i64, scratch_operands = 1 : i64, tpu.core_type = #tpu.core_type<tc>, window_params = [{transform_indices = @transform_0, window_bounds = array<i64: 16, 128>}, {pipeline_mode = #tpu.pipeline_mode<synchronous>, transform_indices = @transform_1, window_bounds = array<i64: 128, 128>}, {pipeline_mode = #tpu.pipeline_mode<synchronous>, transform_indices = @transform_2, window_bounds = array<i64: 1, 128>}, {transform_indices = @transform_3, window_bounds = array<i64: 1, 128, 128>}, {transform_indices = @transform_4, window_bounds = array<i64: 1, 1, 128>}, {pipeline_mode = #tpu.pipeline_mode<synchronous>, transform_indices = @transform_5, window_bounds = array<i64: 128, 128>}, {pipeline_mode = #tpu.pipeline_mode<synchronous>, transform_indices = @transform_6, window_bounds = array<i64: 1, 128>}, {transform_indices = @transform_7, window_bounds = array<i64: 16, 128>}]} {
    %c0_i32 = arith.constant 0 : i32
    %0 = arith.cmpi eq, %arg1, %c0_i32 : i32
    %1 = arith.extui %0 : i1 to i32
    %c0_i32_0 = arith.constant 0 : i32
    %2 = arith.cmpi ne, %1, %c0_i32_0 : i32
    scf.if %2 {
      %c0 = arith.constant 0 : index
      %c0_5 = arith.constant 0 : index
      %11 = vector.load %arg2[%c0, %c0_5] : memref<16x128xbf16, #tpu.memory_space<vmem>>, vector<16x128xbf16>
      %c0_6 = arith.constant 0 : index
      %c0_7 = arith.constant 0 : index
      %12 = vector.load %arg3[%c0_6, %c0_7] : memref<128x128xbf16, #tpu.memory_space<vmem>>, vector<128x128xbf16>
      %cst = arith.constant dense<0.000000e+00> : vector<16x128xf32>
      %13 = tpu.matmul %11, %12, %cst {dimension_numbers = #tpu.dot_dimension_numbers<[1], [0], [0], [1], [0, 0, 1, 1], [], []>} : vector<16x128xbf16>, vector<128x128xbf16>, vector<16x128xf32> -> vector<16x128xf32>
      %c0_8 = arith.constant 0 : index
      %c0_9 = arith.constant 0 : index
      %14 = vector.load %arg4[%c0_8, %c0_9] : memref<1x128xf32, #tpu.memory_space<vmem>>, vector<1x128xf32>
      %15 = vector.broadcast %14 : vector<1x128xf32> to vector<16x128xf32>
      %16 = arith.addf %13, %15 : vector<16x128xf32>
      %cst_10 = arith.constant 0.000000e+00 : f32
      %17 = vector.broadcast %cst_10 : f32 to vector<16x128xf32>
      %18 = arith.maximumf %16, %17 : vector<16x128xf32>
      %19 = arith.truncf %18 : vector<16x128xf32> to vector<16x128xbf16>
      %c0_11 = arith.constant 0 : index
      %c0_12 = arith.constant 0 : index
      %20 = vector.load %arg10[%c0_11, %c0_12] : memref<16x128xbf16, #tpu.memory_space<vmem>>, vector<16x128xbf16>
      tpu.vector_store %arg10[%c0_11, %c0_12], %19 {strides = array<i32>} : memref<16x128xbf16, #tpu.memory_space<vmem>>, vector<16x128xbf16>,
    } else {
    }
    %c0_i32_1 = arith.constant 0 : i32
    %3 = arith.cmpi sgt, %arg1, %c0_i32_1 : i32
    %c2_i32 = arith.constant 2 : i32
    %4 = arith.cmpi slt, %arg1, %c2_i32 : i32
    %5 = arith.andi %3, %4 : i1
    %6 = arith.extui %5 : i1 to i32
    %c0_i32_2 = arith.constant 0 : i32
    %7 = arith.cmpi ne, %6, %c0_i32_2 : i32
    scf.if %7 {
      %c0 = arith.constant 0 : index
      %c0_5 = arith.constant 0 : index
      %11 = vector.load %arg10[%c0, %c0_5] : memref<16x128xbf16, #tpu.memory_space<vmem>>, vector<16x128xbf16>
      %c0_6 = arith.constant 0 : index
      %c0_7 = arith.constant 0 : index
      %c0_8 = arith.constant 0 : index
      %12 = vector.load %arg5[%c0_6, %c0_7, %c0_8] : memref<1x128x128xbf16, #tpu.memory_space<vmem>>, vector<1x128x128xbf16>
      %13 = vector.shape_cast %12 : vector<1x128x128xbf16> to vector<128x128xbf16>
      %cst = arith.constant dense<0.000000e+00> : vector<16x128xf32>
      %14 = tpu.matmul %11, %13, %cst {dimension_numbers = #tpu.dot_dimension_numbers<[1], [0], [0], [1], [0, 0, 1, 1], [], []>} : vector<16x128xbf16>, vector<128x128xbf16>, vector<16x128xf32> -> vector<16x128xf32>
      %c0_9 = arith.constant 0 : index
      %c0_10 = arith.constant 0 : index
      %c0_11 = arith.constant 0 : index
      %15 = vector.load %arg6[%c0_9, %c0_10, %c0_11] : memref<1x1x128xf32, #tpu.memory_space<vmem>>, vector<1x1x128xf32>
      %16 = vector.shape_cast %15 : vector<1x1x128xf32> to vector<1x128xf32>
      %17 = vector.broadcast %16 : vector<1x128xf32> to vector<16x128xf32>
      %18 = arith.addf %14, %17 : vector<16x128xf32>
      %cst_12 = arith.constant 0.000000e+00 : f32
      %19 = vector.broadcast %cst_12 : f32 to vector<16x128xf32>
      %20 = arith.maximumf %18, %19 : vector<16x128xf32>
      %21 = arith.truncf %20 : vector<16x128xf32> to vector<16x128xbf16>
      %c0_13 = arith.constant 0 : index
      %c0_14 = arith.constant 0 : index
      %22 = vector.load %arg10[%c0_13, %c0_14] : memref<16x128xbf16, #tpu.memory_space<vmem>>, vector<16x128xbf16>
      tpu.vector_store %arg10[%c0_13, %c0_14], %21 {strides = array<i32>} : memref<16x128xbf16, #tpu.memory_space<vmem>>, vector<16x128xbf16>,
    } else {
    }
    %c2_i32_3 = arith.constant 2 : i32
    %8 = arith.cmpi eq, %arg1, %c2_i32_3 : i32
    %9 = arith.extui %8 : i1 to i32
    %c0_i32_4 = arith.constant 0 : i32
    %10 = arith.cmpi ne, %9, %c0_i32_4 : i32
    scf.if %10 {
      %c0 = arith.constant 0 : index
      %c0_5 = arith.constant 0 : index
      %11 = vector.load %arg10[%c0, %c0_5] : memref<16x128xbf16, #tpu.memory_space<vmem>>, vector<16x128xbf16>
      %c0_6 = arith.constant 0 : index
      %c0_7 = arith.constant 0 : index
      %12 = vector.load %arg7[%c0_6, %c0_7] : memref<128x128xbf16, #tpu.memory_space<vmem>>, vector<128x128xbf16>
      %cst = arith.constant dense<0.000000e+00> : vector<16x128xf32>
      %13 = tpu.matmul %11, %12, %cst {dimension_numbers = #tpu.dot_dimension_numbers<[1], [0], [0], [1], [0, 0, 1, 1], [], []>} : vector<16x128xbf16>, vector<128x128xbf16>, vector<16x128xf32> -> vector<16x128xf32>
      %c0_8 = arith.constant 0 : index
      %c0_9 = arith.constant 0 : index
      %14 = vector.load %arg8[%c0_8, %c0_9] : memref<1x128xf32, #tpu.memory_space<vmem>>, vector<1x128xf32>
      %15 = vector.broadcast %14 : vector<1x128xf32> to vector<16x128xf32>
      %16 = arith.addf %13, %15 : vector<16x128xf32>
      %c0_10 = arith.constant 0 : index
      %c0_11 = arith.constant 0 : index
      %17 = vector.load %arg9[%c0_10, %c0_11] : memref<16x128xf32, #tpu.memory_space<vmem>>, vector<16x128xf32>
      tpu.vector_store %arg9[%c0_10, %c0_11], %16 {strides = array<i32>} : memref<16x128xf32, #tpu.memory_space<vmem>>, vector<16x128xf32>,
    } else {
    }
    return
  }
  func.func @transform_0(%arg0: i32, %arg1: i32) -> (i32, i32) {
    %c0_i32 = arith.constant 0 : i32
    %c0_i32_0 = arith.constant 0 : i32
    return %arg0, %c0_i32 : i32, i32
  }
  func.func @transform_1(%arg0: i32, %arg1: i32) -> (i32, i32) {
    %c0_i32 = arith.constant 0 : i32
    %c0_i32_0 = arith.constant 0 : i32
    %c0_i32_1 = arith.constant 0 : i32
    return %c0_i32, %c0_i32_0 : i32, i32
  }
  func.func @transform_2(%arg0: i32, %arg1: i32) -> (i32, i32) {
    %c0_i32 = arith.constant 0 : i32
    %c0_i32_0 = arith.constant 0 : i32
    %c0_i32_1 = arith.constant 0 : i32
    return %c0_i32, %c0_i32_0 : i32, i32
  }
  func.func @transform_3(%arg0: i32, %arg1: i32) -> (i32, i32, i32) {
    %c1_i32 = arith.constant 1 : i32
    %0 = arith.subi %arg1, %c1_i32 : i32
    %c0_i32 = arith.constant 0 : i32
    %1 = arith.maxsi %0, %c0_i32 : i32
    %c0_i32_0 = arith.constant 0 : i32
    %2 = arith.minsi %1, %c0_i32_0 : i32
    %c0_i32_1 = arith.constant 0 : i32
    %c0_i32_2 = arith.constant 0 : i32
    %c0_i32_3 = arith.constant 0 : i32
    return %2, %c0_i32_1, %c0_i32_2 : i32, i32, i32
  }
  func.func @transform_4(%arg0: i32, %arg1: i32) -> (i32, i32, i32) {
    %c1_i32 = arith.constant 1 : i32
    %0 = arith.subi %arg1, %c1_i32 : i32
    %c0_i32 = arith.constant 0 : i32
    %1 = arith.maxsi %0, %c0_i32 : i32
    %c0_i32_0 = arith.constant 0 : i32
    %2 = arith.minsi %1, %c0_i32_0 : i32
    %c0_i32_1 = arith.constant 0 : i32
    %c0_i32_2 = arith.constant 0 : i32
    %c0_i32_3 = arith.constant 0 : i32
    return %2, %c0_i32_1, %c0_i32_2 : i32, i32, i32
  }
  func.func @transform_5(%arg0: i32, %arg1: i32) -> (i32, i32) {
    %c0_i32 = arith.constant 0 : i32
    %c0_i32_0 = arith.constant 0 : i32
    %c0_i32_1 = arith.constant 0 : i32
    return %c0_i32, %c0_i32_0 : i32, i32
  }
  func.func @transform_6(%arg0: i32, %arg1: i32) -> (i32, i32) {
    %c0_i32 = arith.constant 0 : i32
    %c0_i32_0 = arith.constant 0 : i32
    %c0_i32_1 = arith.constant 0 : i32
    return %c0_i32, %c0_i32_0 : i32, i32
  }
  func.func @transform_7(%arg0: i32, %arg1: i32) -> (i32, i32) {
    %c0_i32 = arith.constant 0 : i32
    %c0_i32_0 = arith.constant 0 : i32
    return %arg0, %c0_i32 : i32, i32
  }
}

</mosaic_0001>

<llo_original>
// kernel: tpu_custom_call.1
$region0: #{tpu_custom_call.1}
  #allocation0 [shape = 'u32[]', space=smem, size = 0x4, offset = 0x4, fixed_abs, tag = 'smem constant byte address 0x4 - core index']
  #allocation1 [shape = 'u32[144,128]{1,0:T(1,128)}', space=vmem, size = 0x12000, scoped, tag = 'internal scratch']
  #allocation2 [shape = 'bf16[16,128]{1,0:T(16,128)(2,1)}', space=vmem, size = 0x1000, scoped, tag = 'scratch operand']
  %s0 = inlined_call_operand.hbm [shape: bf16[16,128], index: 0, kind: input, shape index: {}]
  %s1 = inlined_call_operand.hbm [shape: bf16[128,128], index: 1, kind: input, shape index: {}]
  %s2 = inlined_call_operand.vmem [shape: f32[1,128], index: 2, kind: input, shape index: {}]
  %s3 = inlined_call_operand.hbm [shape: bf16[1,128,128], index: 3, kind: input, shape index: {}]
  %s4 = inlined_call_operand.vmem [shape: f32[1,1,128], index: 4, kind: input, shape index: {}]
  %s5 = inlined_call_operand.hbm [shape: bf16[128,128], index: 5, kind: input, shape index: {}]
  %s6 = inlined_call_operand.vmem [shape: f32[1,128], index: 6, kind: input, shape index: {}]
  %s7 = inlined_call_operand.hbm [shape: f32[16,128], index: 7, kind: output, shape index: {}]
  %s8 = sld [smem:[#allocation0]]
  $region89: #{tpu_custom_call.1} parent=0
    _
  %s10 = ssub.s32 1, %s8
  %s11 = scalar_select 0, %s10, %s8
  $region1: #{tpu_custom_call.1} parent=0
    #allocation3 [shape = 'u8[4096]{0}', space=vmem, size = 0x1000, scoped, tag = 'input window, operand 0, single buffered']
    #allocation4 [shape = 's32[2]{0}', space=sflag, size = 0x8, scoped, tag = 'scoped memory for tpu_custom_call.1']
    #allocation5 [shape = 's32[2]{0}', space=sflag, size = 0x8, scoped, tag = 'scoped memory for tpu_custom_call.1']
    #allocation6 [shape = 'u8[32768]{0}', space=vmem, size = 0x8000, scoped, tag = 'input window, operand 1, single buffered']
    #allocation7 [shape = 's32[1]{0}', space=sflag, size = 0x4, scoped, tag = 'scoped memory for tpu_custom_call.1']
    #allocation8 [shape = 'u8[65536]{0}', space=vmem, size = 0x10000, scoped, tag = 'input window, operand 3']
    #allocation9 [shape = 'u8[32768]{0}', space=vmem, size = 0x8000, scoped, tag = 'input window, operand 5, single buffered']
    #allocation10 [shape = 'u8[8192]{0}', space=vmem, size = 0x2000, scoped, tag = 'output window, operand 0, single buffered']
    %12 = vsyncpa [#allocation4], 0
    %13 = vsyncpa [#allocation7], 0
    %14 = vsyncpa [#allocation5], 0
    loop: start=0, step=1, limit=5
    $region2: #{tpu_custom_call.1} parent=1 // loop_pre_header
      _
    $region3: #{tpu_custom_call.1} parent=1 // loop_header
      %s16 = sphi 0, %s20
      %p17 = scmp.ge.s32.totalorder %s16, 5
      %s23 = sphi 0, %s35
      %s24 = sphi 0, %s31
      %s25 = sphi 0, %s23
      %s26 = sphi 0, %s24
      %s27 = sphi 0, %s25
      %s28 = sphi 0, %s26
      %s38 = sphi 0, %s40
      %s41 = sphi 0, %s38
      %s42 = sphi 0, %s41
      %s58 = sphi 0, %s42
      %s62 = sphi 0, %s62
      %s64 = sphi 0, %s62
      %s65 = sphi 0, %s64
      %s79 = sphi 0, %s65
      %s83 = sphi 0, %s83
      %s85 = sphi 0, %s83
      %s86 = sphi 0, %s85
      %s100 = sphi 0, %s86
      %s116 = sphi 0, %s118
      %s119 = sphi 0, %s116
      %s120 = sphi 0, %s119
      %s136 = sphi 0, %s120
      %s152 = sphi 0, %s154
      %s155 = sphi 0, %s152
      %s156 = sphi 0, %s155
      %s172 = sphi 0, %s156
      %s176 = sphi 0, %s176
      %s178 = sphi 0, %s176
      %s179 = sphi 0, %s178
      %s193 = sphi 0, %s179
      %s197 = sphi 0, %s197
      %s199 = sphi 0, %s197
      %s200 = sphi 0, %s199
      %s214 = sphi 0, %s200
      %s220 = sphi 0, %s222
      %s223 = sphi 0, %s220
      %s224 = sphi 0, %s223
      %s240 = sphi 0, %s224
    $region4: #{tpu_custom_call.1} parent=1 // loop_header_branch
      %19 = sbr.rel (%p17) target = $region8
    $region5: #{tpu_custom_call.1} parent=1 // loop_body
      %s21 = ssub.s32 %s16, 1
      %s22 = ssub.s32 %s16, 2
      %s29 = sadd.s32 1, %s24
      %p30 = scmp.ge.s32.totalorder %s29, 3
      %s31 = scalar_select %p30, 0, %s29
      %s32 = sadd.s32 1, %s23
      %s33 = scalar_select %p30, %s32, %s23
      %p34 = scmp.ge.s32.totalorder %s33, 1
      %s35 = scalar_select %p34, 0, %s33
      %s36 = ssub.s32 %s23, %s35
      %p37 = scmp.eq.s32.totalorder %s36, 0
      %s39 = sadd.s32 %s38, 1
      %s40 = scalar_select %p37, %s38, %s39
      %p43 = pneg %p37
      %p44 = scmp.eq.s32.totalorder %s16, 2
      %p45 = por %p43, %p44
      %p46 = scmp.ne.s32.totalorder %s38, %s41
      %p47 = scmp.eq.s32.totalorder %s16, 0
      %p48 = por %p46, %p47
      %p49 = scmp.ne.s32.totalorder %s38, %s41
      %p50 = scmp.eq.s32.totalorder %s21, 2
      %p51 = por %p49, %p50
      %p52 = scmp.ne.s32.totalorder %s41, %s42
      %p53 = scmp.eq.s32.totalorder %s21, 0
      %p54 = por %p52, %p53
      %p55 = scmp.ne.s32.totalorder %s41, %s42
      %p56 = scmp.eq.s32.totalorder %s22, 2
      %p57 = por %p55, %p56
      %p59 = scmp.ne.s32.totalorder %s42, %s58
      %p60 = scmp.eq.s32.totalorder %s22, 0
      %p61 = por %p59, %p60
      %s63 = sadd.s32 %s62, 1
      %p66 = scmp.eq.s32.totalorder %s16, 2
      %p67 = scmp.ne.s32.totalorder %s62, %s64
      %p68 = scmp.eq.s32.totalorder %s16, 0
      %p69 = por %p67, %p68
      %p70 = scmp.ne.s32.totalorder %s62, %s64
      %p71 = scmp.eq.s32.totalorder %s21, 2
      %p72 = por %p70, %p71
      %p73 = scmp.ne.s32.totalorder %s64, %s65
      %p74 = scmp.eq.s32.totalorder %s21, 0
      %p75 = por %p73, %p74
      %p76 = scmp.ne.s32.totalorder %s64, %s65
      %p77 = scmp.eq.s32.totalorder %s22, 2
      %p78 = por %p76, %p77
      %p80 = scmp.ne.s32.totalorder %s65, %s79
      %p81 = scmp.eq.s32.totalorder %s22, 0
      %p82 = por %p80, %p81
      %s84 = sadd.s32 %s83, 1
      %p87 = scmp.eq.s32.totalorder %s16, 2
      %p88 = scmp.ne.s32.totalorder %s83, %s85
      %p89 = scmp.eq.s32.totalorder %s16, 0
      %p90 = por %p88, %p89
      %p91 = scmp.ne.s32.totalorder %s83, %s85
      %p92 = scmp.eq.s32.totalorder %s21, 2
      %p93 = por %p91, %p92
      %p94 = scmp.ne.s32.totalorder %s85, %s86
      %p95 = scmp.eq.s32.totalorder %s21, 0
      %p96 = por %p94, %p95
      %p97 = scmp.ne.s32.totalorder %s85, %s86
      %p98 = scmp.eq.s32.totalorder %s22, 2
      %p99 = por %p97, %p98
      %p101 = scmp.ne.s32.totalorder %s86, %s100
      %p102 = scmp.eq.s32.totalorder %s22, 0
      %p103 = por %p101, %p102
      %s104 = ssub.s32 %s24, 1
      %p105 = scmp.gt.s32.totalorder %s104, 0
      %s106 = scalar_select %p105, %s104, 0
      %p107 = scmp.lt.s32.totalorder %s106, 0
      %s108 = scalar_select %p107, %s106, 0
      %s109 = ssub.s32 %s31, 1
      %p110 = scmp.gt.s32.totalorder %s109, 0
      %s111 = scalar_select %p110, %s109, 0
      %p112 = scmp.lt.s32.totalorder %s111, 0
      %s113 = scalar_select %p112, %s111, 0
      %s114 = ssub.s32 %s108, %s113
      %p115 = scmp.eq.s32.totalorder %s114, 0
      %s117 = sadd.s32 %s116, 1
      %s118 = scalar_select %p115, %s116, %s117
      %p121 = pneg %p115
      %p122 = scmp.eq.s32.totalorder %s16, 2
      %p123 = por %p121, %p122
      %p124 = scmp.ne.s32.totalorder %s116, %s119
      %p125 = scmp.eq.s32.totalorder %s16, 0
      %p126 = por %p124, %p125
      %p127 = scmp.ne.s32.totalorder %s116, %s119
      %p128 = scmp.eq.s32.totalorder %s21, 2
      %p129 = por %p127, %p128
      %p130 = scmp.ne.s32.totalorder %s119, %s120
      %p131 = scmp.eq.s32.totalorder %s21, 0
      %p132 = por %p130, %p131
      %p133 = scmp.ne.s32.totalorder %s119, %s120
      %p134 = scmp.eq.s32.totalorder %s22, 2
      %p135 = por %p133, %p134
      %p137 = scmp.ne.s32.totalorder %s120, %s136
      %p138 = scmp.eq.s32.totalorder %s22, 0
      %p139 = por %p137, %p138
      %s140 = ssub.s32 %s24, 1
      %p141 = scmp.gt.s32.totalorder %s140, 0
      %s142 = scalar_select %p141, %s140, 0
      %p143 = scmp.lt.s32.totalorder %s142, 0
      %s144 = scalar_select %p143, %s142, 0
      %s145 = ssub.s32 %s31, 1
      %p146 = scmp.gt.s32.totalorder %s145, 0
      %s147 = scalar_select %p146, %s145, 0
      %p148 = scmp.lt.s32.totalorder %s147, 0
      %s149 = scalar_select %p148, %s147, 0
      %s150 = ssub.s32 %s144, %s149
      %p151 = scmp.eq.s32.totalorder %s150, 0
      %s153 = sadd.s32 %s152, 1
      %s154 = scalar_select %p151, %s152, %s153
      %p157 = pneg %p151
      %p158 = scmp.eq.s32.totalorder %s16, 2
      %p159 = por %p157, %p158
      %p160 = scmp.ne.s32.totalorder %s152, %s155
      %p161 = scmp.eq.s32.totalorder %s16, 0
      %p162 = por %p160, %p161
      %p163 = scmp.ne.s32.totalorder %s152, %s155
      %p164 = scmp.eq.s32.totalorder %s21, 2
      %p165 = por %p163, %p164
      %p166 = scmp.ne.s32.totalorder %s155, %s156
      %p167 = scmp.eq.s32.totalorder %s21, 0
      %p168 = por %p166, %p167
      %p169 = scmp.ne.s32.totalorder %s155, %s156
      %p170 = scmp.eq.s32.totalorder %s22, 2
      %p171 = por %p169, %p170
      %p173 = scmp.ne.s32.totalorder %s156, %s172
      %p174 = scmp.eq.s32.totalorder %s22, 0
      %p175 = por %p173, %p174
      %s177 = sadd.s32 %s176, 1
      %p180 = scmp.eq.s32.totalorder %s16, 2
      %p181 = scmp.ne.s32.totalorder %s176, %s178
      %p182 = scmp.eq.s32.totalorder %s16, 0
      %p183 = por %p181, %p182
      %p184 = scmp.ne.s32.totalorder %s176, %s178
      %p185 = scmp.eq.s32.totalorder %s21, 2
      %p186 = por %p184, %p185
      %p187 = scmp.ne.s32.totalorder %s178, %s179
      %p188 = scmp.eq.s32.totalorder %s21, 0
      %p189 = por %p187, %p188
      %p190 = scmp.ne.s32.totalorder %s178, %s179
      %p191 = scmp.eq.s32.totalorder %s22, 2
      %p192 = por %p190, %p191
      %p194 = scmp.ne.s32.totalorder %s179, %s193
      %p195 = scmp.eq.s32.totalorder %s22, 0
      %p196 = por %p194, %p195
      %s198 = sadd.s32 %s197, 1
      %p201 = scmp.eq.s32.totalorder %s16, 2
      %p202 = scmp.ne.s32.totalorder %s197, %s199
      %p203 = scmp.eq.s32.totalorder %s16, 0
      %p204 = por %p202, %p203
      %p205 = scmp.ne.s32.totalorder %s197, %s199
      %p206 = scmp.eq.s32.totalorder %s21, 2
      %p207 = por %p205, %p206
      %p208 = scmp.ne.s32.totalorder %s199, %s200
      %p209 = scmp.eq.s32.totalorder %s21, 0
      %p210 = por %p208, %p209
      %p211 = scmp.ne.s32.totalorder %s199, %s200
      %p212 = scmp.eq.s32.totalorder %s22, 2
      %p213 = por %p211, %p212
      %p215 = scmp.ne.s32.totalorder %s200, %s214
      %p216 = scmp.eq.s32.totalorder %s22, 0
      %p217 = por %p215, %p216
      %s218 = ssub.s32 %s23, %s35
      %p219 = scmp.eq.s32.totalorder %s218, 0
      %s221 = sadd.s32 %s220, 1
      %s222 = scalar_select %p219, %s220, %s221
      %p225 = pneg %p219
      %p226 = scmp.eq.s32.totalorder %s16, 2
      %p227 = por %p225, %p226
      %p228 = scmp.ne.s32.totalorder %s220, %s223
      %p229 = scmp.eq.s32.totalorder %s16, 0
      %p230 = por %p228, %p229
      %p231 = scmp.ne.s32.totalorder %s220, %s223
      %p232 = scmp.eq.s32.totalorder %s21, 2
      %p233 = por %p231, %p232
      %p234 = scmp.ne.s32.totalorder %s223, %s224
      %p235 = scmp.eq.s32.totalorder %s21, 0
      %p236 = por %p234, %p235
      %p237 = scmp.ne.s32.totalorder %s223, %s224
      %p238 = scmp.eq.s32.totalorder %s22, 2
      %p239 = por %p237, %p238
      %p241 = scmp.ne.s32.totalorder %s224, %s240
      %p242 = scmp.eq.s32.totalorder %s22, 0
      %p243 = por %p241, %p242
      %p244 = scmp.le.s32.totalorder 1, %s16
      %p245 = scmp.lt.s32.totalorder %s16, 4
      %p246 = pnand %p244, %p245
      %p247 = pneg %p246
      // Predicated region
      $region9: #{tpu_custom_call.1} parent=5 // pred_check
        _
      $region10: #{tpu_custom_call.1} parent=5 // pred_check_branch
        %249 = sbr.rel (%p246) target = $region12
      $region11: #{tpu_custom_call.1} parent=5 // pred_region
        %s250 = ssub.s32 %s16, 1
        // Predicated region
        $region13: #{tpu_custom_call.1} parent=11 // pred_check
          %p251 = pneg %p54
        $region14: #{tpu_custom_call.1} parent=11 // pred_check_branch
          %253 = sbr.rel (%p251) target = $region16
        $region15: #{tpu_custom_call.1} parent=11 // pred_region
          %s254 = smul.u32 2, %s25
          %s256 = ssub.s32 128, 128
          %257 = vsyncadd [#allocation4], %s256
          %s258 = smul.addr %s254, 64
          %s259 = scalar_lea.hbm %s0, %s258
          %s260 = sshll.u32 [#allocation3], 4
          %s261 = int_to_ptr.vmem [resolvable:$true] %s260
          %266 = dma.hbm_to_vmem [thread:$0]  %s259, 128, %s261, [#allocation4], 64, 64, 4
        $region16: #{tpu_custom_call.1} parent=11 // pred_fallthru
          _
        // Predicated region
        $region17: #{tpu_custom_call.1} parent=11 // pred_check
          %p267 = pneg %p75
        $region18: #{tpu_custom_call.1} parent=11 // pred_check_branch
          %269 = sbr.rel (%p267) target = $region20
        $region19: #{tpu_custom_call.1} parent=11 // pred_region
          %s271 = ssub.s32 1024, 1024
          %272 = vsyncadd [#allocation7], %s271
          %s273 = sshll.u32 [#allocation6], 4
          %s274 = int_to_ptr.vmem [resolvable:$true] %s273
          %279 = dma.hbm_to_vmem [thread:$0]  %s1, 1024, %s274, [#allocation7], 64, 64, 4
        $region20: #{tpu_custom_call.1} parent=11 // pred_fallthru
          _
        // Predicated region
        $region21: #{tpu_custom_call.1} parent=11 // pred_check
          %p280 = pneg %p96
        $region22: #{tpu_custom_call.1} parent=11 // pred_check_branch
          %282 = sbr.rel (%p280) target = $region24
        $region23: #{tpu_custom_call.1} parent=11 // pred_region
          _
        $region24: #{tpu_custom_call.1} parent=11 // pred_fallthru
          _
        // Predicated region
        $region25: #{tpu_custom_call.1} parent=11 // pred_check
          %p283 = pneg %p189
        $region26: #{tpu_custom_call.1} parent=11 // pred_check_branch
          %285 = sbr.rel (%p283) target = $region28
        $region27: #{tpu_custom_call.1} parent=11 // pred_region
          %s287 = ssub.s32 1024, 1024
          %288 = vsyncadd [#allocation7], %s287
          %s289 = sshll.u32 [#allocation9], 4
          %s290 = int_to_ptr.vmem [resolvable:$true] %s289
          %295 = dma.hbm_to_vmem [thread:$0]  %s5, 1024, %s290, [#allocation7], 64, 64, 4
        $region28: #{tpu_custom_call.1} parent=11 // pred_fallthru
          _
        // Predicated region
        $region29: #{tpu_custom_call.1} parent=11 // pred_check
          %p296 = pneg %p210
        $region30: #{tpu_custom_call.1} parent=11 // pred_check_branch
          %298 = sbr.rel (%p296) target = $region32
        $region31: #{tpu_custom_call.1} parent=11 // pred_region
          _
        $region32: #{tpu_custom_call.1} parent=11 // pred_fallthru
          _
      $region12: #{tpu_custom_call.1} parent=5 // pred_fallthru
        _
      %p299 = scmp.lt.s32.totalorder %s16, 3
      // Predicated region
      $region33: #{tpu_custom_call.1} parent=5 // pred_check
        %p300 = pneg %p299
      $region34: #{tpu_custom_call.1} parent=5 // pred_check_branch
        %302 = sbr.rel (%p300) target = $region36
      $region35: #{tpu_custom_call.1} parent=5 // pred_region
        // Predicated region
        $region37: #{tpu_custom_call.1} parent=35 // pred_check
          %p303 = pneg %p126
        $region38: #{tpu_custom_call.1} parent=35 // pred_check_branch
          %305 = sbr.rel (%p303) target = $region40
        $region39: #{tpu_custom_call.1} parent=35 // pred_region
          %s306 = sand.u32 %s16, 1
          %s307 = scalar_lea.sflag [#allocation4], %s306
          %s308 = sand.u32 %s116, 1
          %s309 = smul.addr %s308, 64
          %s310 = scalar_lea.vmem [#allocation8], %s309
          %s311 = ssub.s32 %s24, 1
          %p312 = scmp.gt.s32.totalorder %s311, 0
          %s313 = scalar_select %p312, %s311, 0
          %p314 = scmp.lt.s32.totalorder %s313, 0
          %s315 = scalar_select %p314, %s313, 0
          %s317 = ssub.s32 1024, 1024
          %318 = vsyncadd %s307, %s317
          %s319 = smul.addr %s315, 16
          %s320 = smul.addr %s319, 64
          %s321 = scalar_lea.hbm %s3, %s320
          %s322 = sshll.u32 %s310, 4
          %s323 = int_to_ptr.vmem [resolvable:$true] %s322
          %328 = dma.hbm_to_vmem [thread:$0]  %s321, 1024, %s323, %s307, 64, 64, 4
        $region40: #{tpu_custom_call.1} parent=35 // pred_fallthru
          _
        // Predicated region
        $region41: #{tpu_custom_call.1} parent=35 // pred_check
          %p329 = pneg %p162
        $region42: #{tpu_custom_call.1} parent=35 // pred_check_branch
          %331 = sbr.rel (%p329) target = $region44
        $region43: #{tpu_custom_call.1} parent=35 // pred_region
          %s332 = ssub.s32 %s24, 1
          %p333 = scmp.gt.s32.totalorder %s332, 0
          %s334 = scalar_select %p333, %s332, 0
          %p335 = scmp.lt.s32.totalorder %s334, 0
          %s336 = scalar_select %p335, %s334, 0
          %p337 = scmp.lt.s32.totalorder %s336, 0
          %s338 = scalar_select %p337, %s336, 0
          %s339 = scalar_lea.vmem %s4, %s338
          %s340 = ssub.s32 %s24, 1
          %p341 = scmp.gt.s32.totalorder %s340, 0
          %s342 = scalar_select %p341, %s340, 0
          %p343 = scmp.lt.s32.totalorder %s342, 0
          %s344 = scalar_select %p343, %s342, 0
        $region44: #{tpu_custom_call.1} parent=35 // pred_fallthru
          _
      $region36: #{tpu_custom_call.1} parent=5 // pred_fallthru
        _
      %p345 = scmp.le.s32.totalorder 1, %s16
      %p346 = scmp.lt.s32.totalorder %s16, 4
      %p347 = pnand %p345, %p346
      %p348 = pneg %p347
      // Predicated region
      $region45: #{tpu_custom_call.1} parent=5 // pred_check
        _
      $region46: #{tpu_custom_call.1} parent=5 // pred_check_branch
        %350 = sbr.rel (%p347) target = $region48
      $region47: #{tpu_custom_call.1} parent=5 // pred_region
        %s351 = ssub.s32 %s16, 1
        // Predicated region
        $region49: #{tpu_custom_call.1} parent=47 // pred_check
          %p352 = pneg %p54
        $region50: #{tpu_custom_call.1} parent=47 // pred_check_branch
          %354 = sbr.rel (%p352) target = $region52
        $region51: #{tpu_custom_call.1} parent=47 // pred_region
          %355 = dma.done [#allocation4], 128
        $region52: #{tpu_custom_call.1} parent=47 // pred_fallthru
          _
        // Predicated region
        $region53: #{tpu_custom_call.1} parent=47 // pred_check
          %p356 = pneg %p75
        $region54: #{tpu_custom_call.1} parent=47 // pred_check_branch
          %358 = sbr.rel (%p356) target = $region56
        $region55: #{tpu_custom_call.1} parent=47 // pred_region
          %359 = dma.done [#allocation7], 1024
        $region56: #{tpu_custom_call.1} parent=47 // pred_fallthru
          _
        %s360 = sand.u32 %s21, 1
        %s361 = scalar_lea.sflag [#allocation4], %s360
        %s362 = sand.u32 %s119, 1
        %s363 = smul.addr %s362, 64
        %s364 = scalar_lea.vmem [#allocation8], %s363
        // Predicated region
        $region57: #{tpu_custom_call.1} parent=47 // pred_check
          %p365 = pneg %p132
        $region58: #{tpu_custom_call.1} parent=47 // pred_check_branch
          %367 = sbr.rel (%p365) target = $region60
        $region59: #{tpu_custom_call.1} parent=47 // pred_region
          %368 = dma.done %s361, 1024
        $region60: #{tpu_custom_call.1} parent=47 // pred_fallthru
          _
        // Predicated region
        $region61: #{tpu_custom_call.1} parent=47 // pred_check
          %p369 = pneg %p189
        $region62: #{tpu_custom_call.1} parent=47 // pred_check_branch
          %371 = sbr.rel (%p369) target = $region64
        $region63: #{tpu_custom_call.1} parent=47 // pred_region
          %372 = dma.done [#allocation7], 1024
        $region64: #{tpu_custom_call.1} parent=47 // pred_fallthru
          _
        %p373 = pneg %p54
        %p374 = pneg %p51
        %p375 = pneg %p75
        %p376 = pneg %p72
        %p377 = pneg %p96
        %p378 = pneg %p93
        %s379 = sand.u32 %s21, 1
        %s380 = scalar_lea.sflag [#allocation4], %s379
        %s381 = sand.u32 %s119, 1
        %s382 = smul.addr %s381, 64
        %s383 = scalar_lea.vmem [#allocation8], %s382
        %p384 = pneg %p132
        %p385 = pneg %p129
        %s386 = ssub.s32 %s26, 1
        %p387 = scmp.gt.s32.totalorder %s386, 0
        %s388 = scalar_select %p387, %s386, 0
        %p389 = scmp.lt.s32.totalorder %s388, 0
        %s390 = scalar_select %p389, %s388, 0
        %p391 = scmp.lt.s32.totalorder %s390, 0
        %s392 = scalar_select %p391, %s390, 0
        %s393 = scalar_lea.vmem %s4, %s392
        %p394 = pneg %p168
        %p395 = pneg %p165
        %p396 = pneg %p189
        %p397 = pneg %p186
        %p398 = pneg %p210
        %p399 = pneg %p207
        %p400 = pneg %p236
        %p401 = pneg %p233
        %s402 = smul.u32 2, %s25
        %s403 = ssub.s32 %s26, 1
        %p404 = scmp.gt.s32.totalorder %s403, 0
        %s405 = scalar_select %p404, %s403, 0
        %p406 = scmp.lt.s32.totalorder %s405, 0
        %s407 = scalar_select %p406, %s405, 0
        %s408 = ssub.s32 %s26, 1
        %p409 = scmp.gt.s32.totalorder %s408, 0
        %s410 = scalar_select %p409, %s408, 0
        %p411 = scmp.lt.s32.totalorder %s410, 0
        %s412 = scalar_select %p411, %s410, 0
        %p413 = scmp.lt.s32.totalorder %s412, 0
        %s414 = scalar_select %p413, %s412, 0
        %s415 = scalar_lea.vmem %s4, %s414
        %s416 = ssub.s32 %s26, 1
        %p417 = scmp.gt.s32.totalorder %s416, 0
        %s418 = scalar_select %p417, %s416, 0
        %p419 = scmp.lt.s32.totalorder %s418, 0
        %s420 = scalar_select %p419, %s418, 0
        %s421 = smul.u32 2, %s25
        %p423 = scmp.eq.s32.totalorder %s26, 0
        // Predicated region
        $region65: #{tpu_custom_call.1} parent=47 // pred_check
          %p424 = pneg %p423
        $region66: #{tpu_custom_call.1} parent=47 // pred_check_branch
          %426 = sbr.rel (%p424) target = $region68
        $region67: #{tpu_custom_call.1} parent=47 // pred_region
          %v427 = vld [vmem:[#allocation3] sm:$0xf]
          %v428 = vld [vmem:[#allocation3 + $0x4] sm:$0xf]
          %v429 = vld [vmem:[#allocation6] sm:$0xf]
          %v430 = vld [vmem:[#allocation6 + $0x4] sm:$0xf]
          %v431 = vld [vmem:[#allocation6 + $0x8] sm:$0xf]
          %v432 = vld [vmem:[#allocation6 + $0xc] sm:$0xf]
          %v433 = vld [vmem:[#allocation6 + $0x10] sm:$0xf]
          %v434 = vld [vmem:[#allocation6 + $0x14] sm:$0xf]
          %v435 = vld [vmem:[#allocation6 + $0x18] sm:$0xf]
          %v436 = vld [vmem:[#allocation6 + $0x1c] sm:$0xf]
          %v437 = vld [vmem:[#allocation6 + $0x20] sm:$0xf]
          %v438 = vld [vmem:[#allocation6 + $0x24] sm:$0xf]
          %v439 = vld [vmem:[#allocation6 + $0x28] sm:$0xf]
          %v440 = vld [vmem:[#allocation6 + $0x2c] sm:$0xf]
          %v441 = vld [vmem:[#allocation6 + $0x30] sm:$0xf]
          %v442 = vld [vmem:[#allocation6 + $0x34] sm:$0xf]
          %v443 = vld [vmem:[#allocation6 + $0x38] sm:$0xf]
          %v444 = vld [vmem:[#allocation6 + $0x3c] sm:$0xf]
          %v445 = vld [vmem:[%s2] sm:$0x1]
          %v447 = vlaneseq
          %v448 = vshrl.u32 %v447, 7
          %v449 = vsub.s32 0, %v448
          %v450 = vrot.slane %v445, %v449
          %v454 = vunpack.c.l.b16 %v427
          %v455 = vunpack.c.l.b16 %v428
          %v456 = vpack.c.b16 %v455, %v454
          %v474 = vunpack.c.l.b16 %v429
          %v475 = vunpack.c.l.b16 %v430
          %v476 = vunpack.c.l.b16 %v431
          %v477 = vunpack.c.l.b16 %v432
          %v478 = vunpack.c.l.b16 %v433
          %v479 = vunpack.c.l.b16 %v434
          %v480 = vunpack.c.l.b16 %v435
          %v481 = vunpack.c.l.b16 %v436
          %v482 = vunpack.c.l.b16 %v437
          %v483 = vunpack.c.l.b16 %v438
          %v484 = vunpack.c.l.b16 %v439
          %v485 = vunpack.c.l.b16 %v440
          %v486 = vunpack.c.l.b16 %v441
          %v487 = vunpack.c.l.b16 %v442
          %v488 = vunpack.c.l.b16 %v443
          %v489 = vunpack.c.l.b16 %v444
          %v490 = vpack.c.b16 %v475, %v474
          %v491 = vpack.c.b16 %v477, %v476
          %v492 = vpack.c.b16 %v479, %v478
          %v493 = vpack.c.b16 %v481, %v480
          %v494 = vpack.c.b16 %v483, %v482
          %v495 = vpack.c.b16 %v485, %v484
          %v496 = vpack.c.b16 %v487, %v486
          %v497 = vpack.c.b16 %v489, %v488
          %506 = vmatprep.subr.bf16.mxu0 0
          %507 = vmatpush1.bf16.msra.mxu0 %v490
          %508 = vmatprep.subr.bf16.mxu0 0
          %509 = vmatpush1.bf16.msra.mxu0 %v491
          %510 = vmatprep.subr.bf16.mxu0 0
          %511 = vmatpush1.bf16.msra.mxu0 %v492
          %512 = vmatprep.subr.bf16.mxu0 0
          %513 = vmatpush1.bf16.msra.mxu0 %v493
          %514 = vmatprep.subr.bf16.mxu0 0
          %515 = vmatpush1.bf16.msra.mxu0 %v494
          %516 = vmatprep.subr.bf16.mxu0 0
          %517 = vmatpush1.bf16.msra.mxu0 %v495
          %518 = vmatprep.subr.bf16.mxu0 0
          %519 = vmatpush1.bf16.msra.mxu0 %v496
          %520 = vmatprep.subr.bf16.mxu0 0
          %521 = vmatpush1.bf16.msra.mxu0 %v497
          %522 = vmatprep.subr.bf16.mxu0 0
          %523 = vmatpush1.bf16.msra.mxu0 0
          %524 = vmatprep.subr.bf16.mxu0 0
          %525 = vmatpush1.bf16.msra.mxu0 0
          %526 = vmatprep.subr.bf16.mxu0 0
          %527 = vmatpush1.bf16.msra.mxu0 0
          %528 = vmatprep.subr.bf16.mxu0 0
          %529 = vmatpush1.bf16.msra.mxu0 0
          %530 = vmatprep.subr.bf16.mxu0 0
          %531 = vmatpush1.bf16.msra.mxu0 0
          %532 = vmatprep.subr.bf16.mxu0 0
          %533 = vmatpush1.bf16.msra.mxu0 0
          %534 = vmatprep.subr.bf16.mxu0 0
          %535 = vmatpush1.bf16.msra.mxu0 0
          %536 = vmatprep.subr.bf16.mxu0 0
          %537 = vmatpush1.bf16.msra.mxu0 0
          %538 = vmatprep.mubr.bf16.mxu0 0
          %539 = vmatmul.mubr.bf16.gmra.mrb[0].mxu0 %v456
          %v540 = vpop.f32.mrb[0].mxu0
          %v541 = vadd.f32 %v450, %v540
          %v542 = vpop.f32.mrb[0].mxu0
          %v543 = vpop.f32.mrb[0].mxu0
          %v544 = vadd.f32 %v450, %v543
          %v545 = vpop.f32.mrb[0].mxu0
          %546 = vdwg.mxu0
          %v547 = vmax.f32 %v541, 0.0
          %v548 = vmax.f32 %v544, 0.0
          %v549 = vpack.c.bf16 %v548, %v547
          %550 = vst [vmem:[#allocation2] sm:$0xff] %v549
        $region68: #{tpu_custom_call.1} parent=47 // pred_fallthru
          _
        %p551 = scmp.gt.s32.totalorder %s26, 0
        %p552 = scmp.lt.s32.totalorder %s26, 2
        %p553 = pnand %p551, %p552
        %p554 = pneg %p553
        // Predicated region
        $region69: #{tpu_custom_call.1} parent=47 // pred_check
          _
        $region70: #{tpu_custom_call.1} parent=47 // pred_check_branch
          %556 = sbr.rel (%p553) target = $region72
        $region71: #{tpu_custom_call.1} parent=47 // pred_region
          %v557 = vld [vmem:[#allocation2] sm:$0xff]
          %v558 = vld [vmem:[%s364] sm:$0xf]
          %v559 = vld [vmem:[%s364 + $0x4] sm:$0xf]
          %v560 = vld [vmem:[%s364 + $0x8] sm:$0xf]
          %v561 = vld [vmem:[%s364 + $0xc] sm:$0xf]
          %v562 = vld [vmem:[%s364 + $0x10] sm:$0xf]
          %v563 = vld [vmem:[%s364 + $0x14] sm:$0xf]
          %v564 = vld [vmem:[%s364 + $0x18] sm:$0xf]
          %v565 = vld [vmem:[%s364 + $0x1c] sm:$0xf]
          %v566 = vld [vmem:[%s364 + $0x20] sm:$0xf]
          %v567 = vld [vmem:[%s364 + $0x24] sm:$0xf]
          %v568 = vld [vmem:[%s364 + $0x28] sm:$0xf]
          %v569 = vld [vmem:[%s364 + $0x2c] sm:$0xf]
          %v570 = vld [vmem:[%s364 + $0x30] sm:$0xf]
          %v571 = vld [vmem:[%s364 + $0x34] sm:$0xf]
          %v572 = vld [vmem:[%s364 + $0x38] sm:$0xf]
          %v573 = vld [vmem:[%s364 + $0x3c] sm:$0xf]
          %v574 = vld [vmem:[%s415] sm:$0x1]
          %v576 = vlaneseq
          %v577 = vshrl.u32 %v576, 7
          %v578 = vsub.s32 0, %v577
          %v579 = vrot.slane %v574, %v578
          %v597 = vunpack.c.l.b16 %v558
          %v598 = vunpack.c.l.b16 %v559
          %v599 = vunpack.c.l.b16 %v560
          %v600 = vunpack.c.l.b16 %v561
          %v601 = vunpack.c.l.b16 %v562
          %v602 = vunpack.c.l.b16 %v563
          %v603 = vunpack.c.l.b16 %v564
          %v604 = vunpack.c.l.b16 %v565
          %v605 = vunpack.c.l.b16 %v566
          %v606 = vunpack.c.l.b16 %v567
          %v607 = vunpack.c.l.b16 %v568
          %v608 = vunpack.c.l.b16 %v569
          %v609 = vunpack.c.l.b16 %v570
          %v610 = vunpack.c.l.b16 %v571
          %v611 = vunpack.c.l.b16 %v572
          %v612 = vunpack.c.l.b16 %v573
          %v613 = vpack.c.b16 %v598, %v597
          %v614 = vpack.c.b16 %v600, %v599
          %v615 = vpack.c.b16 %v602, %v601
          %v616 = vpack.c.b16 %v604, %v603
          %v617 = vpack.c.b16 %v606, %v605
          %v618 = vpack.c.b16 %v608, %v607
          %v619 = vpack.c.b16 %v610, %v609
          %v620 = vpack.c.b16 %v612, %v611
          %629 = vmatprep.subr.bf16.mxu0 0
          %630 = vmatpush1.bf16.msra.mxu0 %v613
          %631 = vmatprep.subr.bf16.mxu0 0
          %632 = vmatpush1.bf16.msra.mxu0 %v614
          %633 = vmatprep.subr.bf16.mxu0 0
          %634 = vmatpush1.bf16.msra.mxu0 %v615
          %635 = vmatprep.subr.bf16.mxu0 0
          %636 = vmatpush1.bf16.msra.mxu0 %v616
          %637 = vmatprep.subr.bf16.mxu0 0
          %638 = vmatpush1.bf16.msra.mxu0 %v617
          %639 = vmatprep.subr.bf16.mxu0 0
          %640 = vmatpush1.bf16.msra.mxu0 %v618
          %641 = vmatprep.subr.bf16.mxu0 0
          %642 = vmatpush1.bf16.msra.mxu0 %v619
          %643 = vmatprep.subr.bf16.mxu0 0
          %644 = vmatpush1.bf16.msra.mxu0 %v620
          %645 = vmatprep.subr.bf16.mxu0 0
          %646 = vmatpush1.bf16.msra.mxu0 0
          %647 = vmatprep.subr.bf16.mxu0 0
          %648 = vmatpush1.bf16.msra.mxu0 0
          %649 = vmatprep.subr.bf16.mxu0 0
          %650 = vmatpush1.bf16.msra.mxu0 0
          %651 = vmatprep.subr.bf16.mxu0 0
          %652 = vmatpush1.bf16.msra.mxu0 0
          %653 = vmatprep.subr.bf16.mxu0 0
          %654 = vmatpush1.bf16.msra.mxu0 0
          %655 = vmatprep.subr.bf16.mxu0 0
          %656 = vmatpush1.bf16.msra.mxu0 0
          %657 = vmatprep.subr.bf16.mxu0 0
          %658 = vmatpush1.bf16.msra.mxu0 0
          %659 = vmatprep.subr.bf16.mxu0 0
          %660 = vmatpush1.bf16.msra.mxu0 0
          %661 = vmatprep.mubr.bf16.mxu0 0
          %662 = vmatmul.mubr.bf16.gmra.mrb[0].mxu0 %v557
          %v663 = vpop.f32.mrb[0].mxu0
          %v664 = vadd.f32 %v579, %v663
          %v665 = vpop.f32.mrb[0].mxu0
          %v666 = vpop.f32.mrb[0].mxu0
          %v667 = vadd.f32 %v579, %v666
          %v668 = vpop.f32.mrb[0].mxu0
          %669 = vdwg.mxu0
          %v670 = vmax.f32 %v664, 0.0
          %v671 = vmax.f32 %v667, 0.0
          %v672 = vpack.c.bf16 %v671, %v670
          %673 = vst [vmem:[#allocation2] sm:$0xff] %v672
        $region72: #{tpu_custom_call.1} parent=47 // pred_fallthru
          _
        %p674 = scmp.eq.s32.totalorder %s26, 2
        // Predicated region
        $region73: #{tpu_custom_call.1} parent=47 // pred_check
          %p675 = pneg %p674
        $region74: #{tpu_custom_call.1} parent=47 // pred_check_branch
          %677 = sbr.rel (%p675) target = $region76
        $region75: #{tpu_custom_call.1} parent=47 // pred_region
          %v678 = vld [vmem:[#allocation2] sm:$0xff]
          %v679 = vld [vmem:[#allocation9] sm:$0xf]
          %v680 = vld [vmem:[#allocation9 + $0x4] sm:$0xf]
          %v681 = vld [vmem:[#allocation9 + $0x8] sm:$0xf]
          %v682 = vld [vmem:[#allocation9 + $0xc] sm:$0xf]
          %v683 = vld [vmem:[#allocation9 + $0x10] sm:$0xf]
          %v684 = vld [vmem:[#allocation9 + $0x14] sm:$0xf]
          %v685 = vld [vmem:[#allocation9 + $0x18] sm:$0xf]
          %v686 = vld [vmem:[#allocation9 + $0x1c] sm:$0xf]
          %v687 = vld [vmem:[#allocation9 + $0x20] sm:$0xf]
          %v688 = vld [vmem:[#allocation9 + $0x24] sm:$0xf]
          %v689 = vld [vmem:[#allocation9 + $0x28] sm:$0xf]
          %v690 = vld [vmem:[#allocation9 + $0x2c] sm:$0xf]
          %v691 = vld [vmem:[#allocation9 + $0x30] sm:$0xf]
          %v692 = vld [vmem:[#allocation9 + $0x34] sm:$0xf]
          %v693 = vld [vmem:[#allocation9 + $0x38] sm:$0xf]
          %v694 = vld [vmem:[#allocation9 + $0x3c] sm:$0xf]
          %v695 = vld [vmem:[%s6] sm:$0x1]
          %v697 = vlaneseq
          %v698 = vshrl.u32 %v697, 7
          %v699 = vsub.s32 0, %v698
          %v700 = vrot.slane %v695, %v699
          %v718 = vunpack.c.l.b16 %v679
          %v719 = vunpack.c.l.b16 %v680
          %v720 = vunpack.c.l.b16 %v681
          %v721 = vunpack.c.l.b16 %v682
          %v722 = vunpack.c.l.b16 %v683
          %v723 = vunpack.c.l.b16 %v684
          %v724 = vunpack.c.l.b16 %v685
          %v725 = vunpack.c.l.b16 %v686
          %v726 = vunpack.c.l.b16 %v687
          %v727 = vunpack.c.l.b16 %v688
          %v728 = vunpack.c.l.b16 %v689
          %v729 = vunpack.c.l.b16 %v690
          %v730 = vunpack.c.l.b16 %v691
          %v731 = vunpack.c.l.b16 %v692
          %v732 = vunpack.c.l.b16 %v693
          %v733 = vunpack.c.l.b16 %v694
          %v734 = vpack.c.b16 %v719, %v718
          %v735 = vpack.c.b16 %v721, %v720
          %v736 = vpack.c.b16 %v723, %v722
          %v737 = vpack.c.b16 %v725, %v724
          %v738 = vpack.c.b16 %v727, %v726
          %v739 = vpack.c.b16 %v729, %v728
          %v740 = vpack.c.b16 %v731, %v730
          %v741 = vpack.c.b16 %v733, %v732
          %750 = vmatprep.subr.bf16.mxu0 0
          %751 = vmatpush1.bf16.msra.mxu0 %v734
          %752 = vmatprep.subr.bf16.mxu0 0
          %753 = vmatpush1.bf16.msra.mxu0 %v735
          %754 = vmatprep.subr.bf16.mxu0 0
          %755 = vmatpush1.bf16.msra.mxu0 %v736
          %756 = vmatprep.subr.bf16.mxu0 0
          %757 = vmatpush1.bf16.msra.mxu0 %v737
          %758 = vmatprep.subr.bf16.mxu0 0
          %759 = vmatpush1.bf16.msra.mxu0 %v738
          %760 = vmatprep.subr.bf16.mxu0 0
          %761 = vmatpush1.bf16.msra.mxu0 %v739
          %762 = vmatprep.subr.bf16.mxu0 0
          %763 = vmatpush1.bf16.msra.mxu0 %v740
          %764 = vmatprep.subr.bf16.mxu0 0
          %765 = vmatpush1.bf16.msra.mxu0 %v741
          %766 = vmatprep.subr.bf16.mxu0 0
          %767 = vmatpush1.bf16.msra.mxu0 0
          %768 = vmatprep.subr.bf16.mxu0 0
          %769 = vmatpush1.bf16.msra.mxu0 0
          %770 = vmatprep.subr.bf16.mxu0 0
          %771 = vmatpush1.bf16.msra.mxu0 0
          %772 = vmatprep.subr.bf16.mxu0 0
          %773 = vmatpush1.bf16.msra.mxu0 0
          %774 = vmatprep.subr.bf16.mxu0 0
          %775 = vmatpush1.bf16.msra.mxu0 0
          %776 = vmatprep.subr.bf16.mxu0 0
          %777 = vmatpush1.bf16.msra.mxu0 0
          %778 = vmatprep.subr.bf16.mxu0 0
          %779 = vmatpush1.bf16.msra.mxu0 0
          %780 = vmatprep.subr.bf16.mxu0 0
          %781 = vmatpush1.bf16.msra.mxu0 0
          %782 = vmatprep.mubr.bf16.mxu0 0
          %783 = vmatmul.mubr.bf16.gmra.mrb[0].mxu0 %v678
          %v784 = vpop.f32.mrb[0].mxu0
          %v785 = vadd.f32 %v700, %v784
          %v786 = vpop.f32.mrb[0].mxu0
          %v787 = vpop.f32.mrb[0].mxu0
          %v788 = vadd.f32 %v700, %v787
          %v789 = vpop.f32.mrb[0].mxu0
          %790 = vdwg.mxu0
          %791 = vst [vmem:[#allocation10] sm:$0xff] %v785
          %792 = vst [vmem:[#allocation10 + $0x8] sm:$0xff] %v788
        $region76: #{tpu_custom_call.1} parent=47 // pred_fallthru
          _
        // Predicated region
        $region77: #{tpu_custom_call.1} parent=47 // pred_check
          %p793 = pneg %p233
        $region78: #{tpu_custom_call.1} parent=47 // pred_check_branch
          %795 = sbr.rel (%p793) target = $region80
        $region79: #{tpu_custom_call.1} parent=47 // pred_region
          %s796 = smul.u32 2, %s25
          %s798 = ssub.s32 256, 256
          %799 = vsyncadd [#allocation5], %s798
          %s800 = smul.addr %s796, 128
          %s801 = scalar_lea.hbm %s7, %s800
          %s802 = sshll.u32 [#allocation10], 4
          %s803 = int_to_ptr.vmem [resolvable:$true] %s802
          %808 = dma.vmem_to_hbm [thread:$0]  %s803, 256, %s801, [#allocation5], 128, 128, 8
        $region80: #{tpu_custom_call.1} parent=47 // pred_fallthru
          _
        // Predicated region
        $region81: #{tpu_custom_call.1} parent=47 // pred_check
          %p809 = pneg %p233
        $region82: #{tpu_custom_call.1} parent=47 // pred_check_branch
          %811 = sbr.rel (%p809) target = $region84
        $region83: #{tpu_custom_call.1} parent=47 // pred_region
          %812 = dma.done [#allocation5], 256
        $region84: #{tpu_custom_call.1} parent=47 // pred_fallthru
          _
      $region48: #{tpu_custom_call.1} parent=5 // pred_fallthru
        _
      %p813 = scmp.le.s32.totalorder 2, %s16
      // Predicated region
      $region85: #{tpu_custom_call.1} parent=5 // pred_check
        %p814 = pneg %p813
      $region86: #{tpu_custom_call.1} parent=5 // pred_check_branch
        %816 = sbr.rel (%p814) target = $region88
      $region87: #{tpu_custom_call.1} parent=5 // pred_region
        %s817 = ssub.s32 %s16, 2
      $region88: #{tpu_custom_call.1} parent=5 // pred_fallthru
        _
    $region6: #{tpu_custom_call.1} parent=1 // loop_footer
      %s20 = sadd.s32 1, %s16
    $region7: #{tpu_custom_call.1} parent=1 // loop_footer_branch
      %15 = sbr.rel target = $region3
    $region8: #{tpu_custom_call.1} parent=1 // loop_exit
      _
    %818 = vsyncpa [#allocation4], 1
    %s819 = scalar_lea.sflag [#allocation4], 1
    %820 = vsyncpa %s819, 1
    %821 = vsyncpa [#allocation7], 1
    %822 = vsyncpa [#allocation5], 1
    %s823 = scalar_lea.sflag [#allocation5], 1
    %824 = vsyncpa %s823, 1

</llo_original>
